<compile_context>
chip_gen: v5e
topology: v5e:2x2
jax: 0.10.0
libtpu: 0.0.40
codegen_flags: <defaults>
</compile_context>

<pallas_src>
import functools

import jax
import jax.numpy as jnp
from jax.experimental import pallas as pl
from jax.experimental.pallas import tpu as pltpu


def _mlp_kernel(x_ref, w1_ref, b1_ref, w2_ref, b2_ref, w3_ref, b3_ref, o_ref,
                *, chunk):
    """One [2, tb] -> [1, tb] tile, processed in `chunk`-lane sub-slabs."""
    tb = x_ref.shape[-1]
    n_chunks = tb // chunk

    @pl.loop(0, n_chunks)
    def _(c):
        s = pl.multiple_of(c * chunk, chunk)      # 128-aligned lane offset
        # [2, chunk] bf16 slab (cast is a no-op when x already streams as bf16).
        xc = x_ref[:, pl.ds(s, chunk)].astype(jnp.bfloat16)

        # layer 1: [20, 2] @ [2, chunk] -> [20, chunk]; f32 accumulate + bias.
        h1 = jnp.dot(w1_ref[...], xc, preferred_element_type=jnp.float32)
        h1 = jnp.maximum(h1 + b1_ref[...], 0.0).astype(jnp.bfloat16)

        # layer 2: [20, 20] @ [20, chunk] -> [20, chunk]
        h2 = jnp.dot(w2_ref[...], h1, preferred_element_type=jnp.float32)
        h2 = jnp.maximum(h2 + b2_ref[...], 0.0).astype(jnp.bfloat16)

        # layer 3: [1, 20] @ [20, chunk] -> [1, chunk]   (lane-dense output)
        y = jnp.dot(w3_ref[...], h2, preferred_element_type=jnp.float32)
        o_ref[:, pl.ds(s, chunk)] = (y + b3_ref[...]).astype(o_ref.dtype)


def _round_up(v, m):
    return ((v + m - 1) // m) * m


def circle_model_v2_t(xT, params, *, block_b=65536, chunk=512):
    """Feature-major forward: xT [2, B] (f32 or bf16) -> y^T [1, B] f32.

    Zero extra HBM passes when B is a multiple of the batch tile.
    """
    w1, b1, w2, b2, w3, b3 = params
    assert xT.shape[0] == 2
    B = xT.shape[1]

    # Batch tile: multiple of 128 (BlockSpec rule), capped so grid_b >= 2 when
    # the batch allows (v7x megacore actually splits work).
    block_b = max(128, (block_b // 128) * 128)
    b128 = _round_up(B, 128)
    tb = min(block_b, b128)
    if b128 >= 2 * 128:
        tb = min(tb, max(128, (b128 // 2 // 128) * 128))
    grid_b = pl.cdiv(B, tb)
    b_pad = grid_b * tb

    # Inner lane-chunk (tb is always a multiple of 128).
    ch = min(chunk, tb)
    if tb % ch != 0:
        ch = 128

    if b_pad != B:
        # Padded columns flow relu(bias) garbage through the net; this is safe
        # only because of the final [:, :B] slice below — keep that invariant.
        xT = jnp.pad(xT, ((0, 0), (0, b_pad - B)))

    # Tiny one-time casts: weights stream as bf16, biases stay f32 [out, 1].
    w1b, w2b, w3b = (w.astype(jnp.bfloat16) for w in (w1, w2, w3))
    b1c = b1.astype(jnp.float32)[:, None]
    b2c = b2.astype(jnp.float32)[:, None]
    b3c = b3.astype(jnp.float32)[:, None]

    n_param = sum(a.size for a in (w1, b1, w2, b2, w3, b3))
    cost = pl.CostEstimate(
        flops=int(2 * (2 * 20 + 20 * 20 + 20 * 1) * b_pad),
        transcendentals=0,
        bytes_accessed=int(xT.dtype.itemsize * 2 * b_pad + 4 * b_pad + 2 * n_param),
    )

    const = lambda i: (0, 0)  # weights/biases: one VMEM-resident block for all steps
    yT = pl.pallas_call(
        functools.partial(_mlp_kernel, chunk=ch),
        out_shape=jax.ShapeDtypeStruct((1, b_pad), jnp.float32),
        grid=(grid_b,),
        in_specs=[
            pl.BlockSpec((2, tb), lambda i: (0, i)),       # x^T tile (lane-dense)
            pl.BlockSpec((20, 2), const),                  # W1 (bf16)
            pl.BlockSpec((20, 1), const),                  # b1 (f32)
            pl.BlockSpec((20, 20), const),                 # W2 (bf16)
            pl.BlockSpec((20, 1), const),                  # b2 (f32)
            pl.BlockSpec((1, 20), const),                  # W3 (bf16)
            pl.BlockSpec((1, 1), const),                   # b3 (f32)
        ],
        out_specs=pl.BlockSpec((1, tb), lambda i: (0, i)),  # y^T tile (lane-dense)
        compiler_params=pltpu.CompilerParams(
            dimension_semantics=("parallel",),              # shard batch across TCs (v7x)
            vmem_limit_bytes=64 * 1024 * 1024,              # headroom for block_b sweeps
        ),
        cost_estimate=cost,
    )(xT, w1b, b1c, w2b, b2c, w3b, b3c)

    return yT if b_pad == B else yT[:, :B]


def circle_model_v2(x, params, **kw):
    """PyTorch-faithful interface: x [B, 2] -> [B, 1].

    Incurs one transpose each way; prefer circle_model_v2_t with feature-major
    data for the zero-copy path.
    """
    # TODO(synk): de-interleave the row-major [B,2] layout in-kernel (XLU
    # strided-lane slice / pltpu.roll) to also drop this transpose pass.
    return circle_model_v2_t(x.T, params, **kw).T


def init_params(key):
    """PyTorch nn.Linear-style init: W:[out,in], b:[out], U(-1/sqrt(fan_in), +)."""
    k1, k2, k3, k4, k5, k6 = jax.random.split(key, 6)

    def linear(kw, kb, fan_in, fan_out):
        bound = 1.0 / (fan_in ** 0.5)
        w = jax.random.uniform(kw, (fan_out, fan_in), jnp.float32, -bound, bound)
        b = jax.random.uniform(kb, (fan_out,), jnp.float32, -bound, bound)
        return w, b

    w1, b1 = linear(k1, k2, 2, 20)
    w2, b2 = linear(k3, k4, 20, 20)
    w3, b3 = linear(k5, k6, 20, 1)
    return (w1, b1, w2, b2, w3, b3)


if __name__ == "__main__":
    key = jax.random.PRNGKey(0)
    pkey, xkey = jax.random.split(key)
    params = init_params(pkey)

    # Fast path: feature-major bf16 activations (zero wrapper copies, no pad).
    B = 1024
    xT = jax.random.normal(xkey, (2, B), jnp.float32).astype(jnp.bfloat16)
    yT = jax.block_until_ready(circle_model_v2_t(xT, params))
    assert yT.shape == (1, B)

    # PyTorch-faithful [B, 2] interface, exercising padding (1000 % 256 != 0),
    # a 4-step grid, and a multi-iteration inner chunk loop (256 / 128 = 2).
    B2 = 1000
    x_small = xT.astype(jnp.float32).T[:B2]                   # [1000, 2] f32
    y_small = jax.block_until_ready(
        circle_model_v2(x_small, params, block_b=256, chunk=128))
    assert y_small.shape == (B2, 1)

    # References.  w*/x values are the bf16-rounded ones the kernel sees.
    w1, b1, w2, b2, w3, b3 = params
    xr = xT.astype(jnp.float32).T
    w1r, w2r, w3r = (w.astype(jnp.bfloat16).astype(jnp.float32)
                     for w in (w1, w2, w3))

    # (a) mixed-precision reference mirroring the kernel's bf16 intermediates
    #     -> proves layout / indexing correctness tightly.
    mp = jnp.maximum(xr @ w1r.T + b1, 0.0).astype(jnp.bfloat16).astype(jnp.float32)
    mp = jnp.maximum(mp @ w2r.T + b2, 0.0).astype(jnp.bfloat16).astype(jnp.float32)
    mp = mp @ w3r.T + b3                                       # [B, 1]
    assert jnp.allclose(yT, mp.T, atol=2e-3, rtol=2e-3), \
        float(jnp.max(jnp.abs(yT - mp.T)))
    assert jnp.allclose(y_small, mp[:B2], atol=2e-3, rtol=2e-3)

    # (b) pure-f32 reference (same math as the PyTorch forward: x @ W.T + b)
    #     -> semantics preserved within bf16 streaming error.
    ref = jnp.maximum(xr @ w1r.T + b1, 0.0)
    ref = jnp.maximum(ref @ w2r.T + b2, 0.0)
    ref = ref @ w3r.T + b3
    assert jnp.allclose(yT, ref.T, atol=1e-1, rtol=1e-1)
    assert jnp.allclose(y_small, ref[:B2], atol=1e-1, rtol=1e-1)

    print("KERNEL_OK")
</pallas_src>

<mosaic_0001>
module attributes {stable_mosaic.version = 11 : i64} {
  func.func @_mlp_kernel(%arg0: i32, %arg1: memref<2x512xbf16, #tpu.memory_space<vmem>>, %arg2: memref<20x2xbf16, #tpu.memory_space<vmem>>, %arg3: memref<20x1xf32, #tpu.memory_space<vmem>>, %arg4: memref<20x20xbf16, #tpu.memory_space<vmem>>, %arg5: memref<20x1xf32, #tpu.memory_space<vmem>>, %arg6: memref<1x20xbf16, #tpu.memory_space<vmem>>, %arg7: memref<1x1xf32, #tpu.memory_space<vmem>>, %arg8: memref<1x512xf32, #tpu.memory_space<vmem>>) attributes {dimension_semantics = [#tpu.dimension_semantics<parallel>], iteration_bounds = array<i64: 2>, scalar_prefetch = 0 : i64, scratch_operands = 0 : i64, tpu.core_type = #tpu.core_type<tc>, window_params = [{transform_indices = @transform_0, window_bounds = array<i64: 2, 512>}, {pipeline_mode = #tpu.pipeline_mode<synchronous>, transform_indices = @transform_1, window_bounds = array<i64: 20, 2>}, {pipeline_mode = #tpu.pipeline_mode<synchronous>, transform_indices = @transform_2, window_bounds = array<i64: 20, 1>}, {pipeline_mode = #tpu.pipeline_mode<synchronous>, transform_indices = @transform_3, window_bounds = array<i64: 20, 20>}, {pipeline_mode = #tpu.pipeline_mode<synchronous>, transform_indices = @transform_4, window_bounds = array<i64: 20, 1>}, {pipeline_mode = #tpu.pipeline_mode<synchronous>, transform_indices = @transform_5, window_bounds = array<i64: 1, 20>}, {pipeline_mode = #tpu.pipeline_mode<synchronous>, transform_indices = @transform_6, window_bounds = array<i64: 1, 1>}, {transform_indices = @transform_7, window_bounds = array<i64: 1, 512>}]} {
    %c0_i32 = arith.constant 0 : i32
    %c1_i32 = arith.constant 1 : i32
    %0 = arith.muli %c0_i32, %c1_i32 : i32
    %c0_i32_0 = arith.constant 0 : i32
    %1 = arith.addi %c0_i32_0, %0 : i32
    %c512_i32 = arith.constant 512 : i32
    %2 = arith.muli %1, %c512_i32 : i32
    %3 = tpu.assume_multiple %2, 512 : i32
    %c0 = arith.constant 0 : index
    %4 = arith.index_cast %3 : i32 to index
    %5 = vector.load %arg1[%c0, %4] : memref<2x512xbf16, #tpu.memory_space<vmem>>, vector<2x512xbf16>
    %c0_1 = arith.constant 0 : index
    %c0_2 = arith.constant 0 : index
    %6 = vector.load %arg2[%c0_1, %c0_2] : memref<20x2xbf16, #tpu.memory_space<vmem>>, vector<20x2xbf16>
    %cst = arith.constant dense<0.000000e+00> : vector<20x512xf32>
    %7 = tpu.matmul %6, %5, %cst {dimension_numbers = #tpu.dot_dimension_numbers<[1], [0], [0], [1], [0, 0, 1, 1], [], []>} : vector<20x2xbf16>, vector<2x512xbf16>, vector<20x512xf32> -> vector<20x512xf32>
    %c0_3 = arith.constant 0 : index
    %c0_4 = arith.constant 0 : index
    %8 = vector.load %arg3[%c0_3, %c0_4] : memref<20x1xf32, #tpu.memory_space<vmem>>, vector<20x1xf32>
    %9 = vector.broadcast %8 : vector<20x1xf32> to vector<20x512xf32>
    %10 = arith.addf %7, %9 : vector<20x512xf32>
    %cst_5 = arith.constant 0.000000e+00 : f32
    %11 = vector.broadcast %cst_5 : f32 to vector<20x512xf32>
    %12 = arith.maximumf %10, %11 : vector<20x512xf32>
    %13 = arith.truncf %12 : vector<20x512xf32> to vector<20x512xbf16>
    %c0_6 = arith.constant 0 : index
    %c0_7 = arith.constant 0 : index
    %14 = vector.load %arg4[%c0_6, %c0_7] : memref<20x20xbf16, #tpu.memory_space<vmem>>, vector<20x20xbf16>
    %cst_8 = arith.constant dense<0.000000e+00> : vector<20x512xf32>
    %15 = tpu.matmul %14, %13, %cst_8 {dimension_numbers = #tpu.dot_dimension_numbers<[1], [0], [0], [1], [0, 0, 1, 1], [], []>} : vector<20x20xbf16>, vector<20x512xbf16>, vector<20x512xf32> -> vector<20x512xf32>
    %c0_9 = arith.constant 0 : index
    %c0_10 = arith.constant 0 : index
    %16 = vector.load %arg5[%c0_9, %c0_10] : memref<20x1xf32, #tpu.memory_space<vmem>>, vector<20x1xf32>
    %17 = vector.broadcast %16 : vector<20x1xf32> to vector<20x512xf32>
    %18 = arith.addf %15, %17 : vector<20x512xf32>
    %cst_11 = arith.constant 0.000000e+00 : f32
    %19 = vector.broadcast %cst_11 : f32 to vector<20x512xf32>
    %20 = arith.maximumf %18, %19 : vector<20x512xf32>
    %21 = arith.truncf %20 : vector<20x512xf32> to vector<20x512xbf16>
    %c0_12 = arith.constant 0 : index
    %c0_13 = arith.constant 0 : index
    %22 = vector.load %arg6[%c0_12, %c0_13] : memref<1x20xbf16, #tpu.memory_space<vmem>>, vector<1x20xbf16>
    %cst_14 = arith.constant dense<0.000000e+00> : vector<1x512xf32>
    %23 = tpu.matmul %22, %21, %cst_14 {dimension_numbers = #tpu.dot_dimension_numbers<[1], [0], [0], [1], [0, 0, 1, 1], [], []>} : vector<1x20xbf16>, vector<20x512xbf16>, vector<1x512xf32> -> vector<1x512xf32>
    %c0_15 = arith.constant 0 : index
    %c0_16 = arith.constant 0 : index
    %24 = vector.load %arg7[%c0_15, %c0_16] : memref<1x1xf32, #tpu.memory_space<vmem>>, vector<1x1xf32>
    %25 = vector.broadcast %24 : vector<1x1xf32> to vector<1x512xf32>
    %26 = arith.addf %23, %25 : vector<1x512xf32>
    %c0_17 = arith.constant 0 : index
    %27 = arith.index_cast %3 : i32 to index
    %28 = vector.load %arg8[%c0_17, %27] : memref<1x512xf32, #tpu.memory_space<vmem>>, vector<1x512xf32>
    tpu.vector_store %arg8[%c0_17, %27], %26 {strides = array<i32>} : memref<1x512xf32, #tpu.memory_space<vmem>>, vector<1x512xf32>,
    %c1_i32_18 = arith.constant 1 : i32
    return
  }
  func.func @transform_0(%arg0: i32) -> (i32, i32) {
    %c0_i32 = arith.constant 0 : i32
    %c0_i32_0 = arith.constant 0 : i32
    return %c0_i32, %arg0 : i32, i32
  }
  func.func @transform_1(%arg0: i32) -> (i32, i32) {
    %c0_i32 = arith.constant 0 : i32
    %c0_i32_0 = arith.constant 0 : i32
    %c0_i32_1 = arith.constant 0 : i32
    return %c0_i32, %c0_i32_0 : i32, i32
  }
  func.func @transform_2(%arg0: i32) -> (i32, i32) {
    %c0_i32 = arith.constant 0 : i32
    %c0_i32_0 = arith.constant 0 : i32
    %c0_i32_1 = arith.constant 0 : i32
    return %c0_i32, %c0_i32_0 : i32, i32
  }
  func.func @transform_3(%arg0: i32) -> (i32, i32) {
    %c0_i32 = arith.constant 0 : i32
    %c0_i32_0 = arith.constant 0 : i32
    %c0_i32_1 = arith.constant 0 : i32
    return %c0_i32, %c0_i32_0 : i32, i32
  }
  func.func @transform_4(%arg0: i32) -> (i32, i32) {
    %c0_i32 = arith.constant 0 : i32
    %c0_i32_0 = arith.constant 0 : i32
    %c0_i32_1 = arith.constant 0 : i32
    return %c0_i32, %c0_i32_0 : i32, i32
  }
  func.func @transform_5(%arg0: i32) -> (i32, i32) {
    %c0_i32 = arith.constant 0 : i32
    %c0_i32_0 = arith.constant 0 : i32
    %c0_i32_1 = arith.constant 0 : i32
    return %c0_i32, %c0_i32_0 : i32, i32
  }
  func.func @transform_6(%arg0: i32) -> (i32, i32) {
    %c0_i32 = arith.constant 0 : i32
    %c0_i32_0 = arith.constant 0 : i32
    %c0_i32_1 = arith.constant 0 : i32
    return %c0_i32, %c0_i32_0 : i32, i32
  }
  func.func @transform_7(%arg0: i32) -> (i32, i32) {
    %c0_i32 = arith.constant 0 : i32
    %c0_i32_0 = arith.constant 0 : i32
    return %c0_i32, %arg0 : i32, i32
  }
}

</mosaic_0001>

<llo_original>
// kernel: tpu_custom_call.1
$region0: #{tpu_custom_call.1}
  #allocation0 [shape = 'u32[]', space=smem, size = 0x4, offset = 0x4, fixed_abs, tag = 'smem constant byte address 0x4 - core index']
  #allocation1 [shape = 'u32[72,128]{1,0:T(1,128)}', space=vmem, size = 0x9000, scoped, tag = 'internal scratch']
  #allocation2 [shape = 'f32[1,1]{1,0:T(1,128)S(1)}', space=vmem, size = 0x200, scoped, tag = 'scoped memory for tpu_custom_call.1']
  %s0 = inlined_call_operand.vmem [shape: bf16[2,1024], index: 0, kind: input, shape index: {}]
  %s1 = inlined_call_operand.vmem [shape: bf16[20,2], index: 1, kind: input, shape index: {}]
  %s2 = inlined_call_operand.vmem [shape: f32[20,1], index: 2, kind: input, shape index: {}]
  %s3 = inlined_call_operand.vmem [shape: bf16[20,20], index: 3, kind: input, shape index: {}]
  %s4 = inlined_call_operand.vmem [shape: f32[20,1], index: 4, kind: input, shape index: {}]
  %s5 = inlined_call_operand.vmem [shape: bf16[1,20], index: 5, kind: input, shape index: {}]
  %s6 = inlined_call_operand.<no memory space> [shape: f32[1,1], index: 6, kind: input, shape index: {}]
  %s7 = inlined_call_operand.hbm [shape: f32[1,1024], index: 7, kind: output, shape index: {}]
  %s8 = sld [smem:[#allocation0]]
  $region61: #{tpu_custom_call.1} parent=0
    _
  %s10 = ssub.s32 1, %s8
  %s11 = scalar_select 0, %s10, %s8
  %v12 = vstv %s6
  %13 = vst [vmem:[#allocation2] sm:$0x1] %v12
  $region1: #{tpu_custom_call.1} parent=0
    #allocation3 [shape = 'u8[4096]{0}', space=vmem, size = 0x1000, scoped, tag = 'output window, operand 0']
    #allocation4 [shape = 's32[2]{0}', space=sflag, size = 0x8, scoped, tag = 'scoped memory for tpu_custom_call.1']
    %14 = vsyncpa [#allocation4], 0
    %s15 = scalar_lea.sflag [#allocation4], 1
    %16 = vsyncpa %s15, 0
    loop: start=0, step=1, limit=4
    $region2: #{tpu_custom_call.1} parent=1 // loop_pre_header
      _
    $region3: #{tpu_custom_call.1} parent=1 // loop_header
      %s18 = sphi 0, %s22
      %p19 = scmp.ge.s32.totalorder %s18, 4
      %s28 = sphi 0, %s30
      %s31 = sphi 0, %s28
      %s32 = sphi 0, %s31
      %s48 = sphi 0, %s32
      %s52 = sphi 0, %s52
      %s54 = sphi 0, %s52
      %s55 = sphi 0, %s54
      %s69 = sphi 0, %s55
      %s73 = sphi 0, %s73
      %s75 = sphi 0, %s73
      %s76 = sphi 0, %s75
      %s90 = sphi 0, %s76
      %s94 = sphi 0, %s94
      %s96 = sphi 0, %s94
      %s97 = sphi 0, %s96
      %s111 = sphi 0, %s97
      %s115 = sphi 0, %s115
      %s117 = sphi 0, %s115
      %s118 = sphi 0, %s117
      %s132 = sphi 0, %s118
      %s136 = sphi 0, %s136
      %s138 = sphi 0, %s136
      %s139 = sphi 0, %s138
      %s153 = sphi 0, %s139
      %s157 = sphi 0, %s157
      %s159 = sphi 0, %s157
      %s160 = sphi 0, %s159
      %s174 = sphi 0, %s160
      %s180 = sphi 0, %s182
      %s183 = sphi 0, %s180
      %s184 = sphi 0, %s183
      %s200 = sphi 0, %s184
    $region4: #{tpu_custom_call.1} parent=1 // loop_header_branch
      %21 = sbr.rel (%p19) target = $region8
    $region5: #{tpu_custom_call.1} parent=1 // loop_body
      %s23 = ssub.s32 %s18, 1
      %s24 = ssub.s32 %s18, 2
      %s25 = sadd.s32 %s18, 1
      %s26 = ssub.s32 %s18, %s25
      %p27 = scmp.eq.s32.totalorder %s26, 0
      %s29 = sadd.s32 %s28, 1
      %s30 = scalar_select %p27, %s28, %s29
      %p33 = pneg %p27
      %p34 = scmp.eq.s32.totalorder %s18, 1
      %p35 = por %p33, %p34
      %p36 = scmp.ne.s32.totalorder %s28, %s31
      %p37 = scmp.eq.s32.totalorder %s18, 0
      %p38 = por %p36, %p37
      %p39 = scmp.ne.s32.totalorder %s28, %s31
      %p40 = scmp.eq.s32.totalorder %s23, 1
      %p41 = por %p39, %p40
      %p42 = scmp.ne.s32.totalorder %s31, %s32
      %p43 = scmp.eq.s32.totalorder %s23, 0
      %p44 = por %p42, %p43
      %p45 = scmp.ne.s32.totalorder %s31, %s32
      %p46 = scmp.eq.s32.totalorder %s24, 1
      %p47 = por %p45, %p46
      %p49 = scmp.ne.s32.totalorder %s32, %s48
      %p50 = scmp.eq.s32.totalorder %s24, 0
      %p51 = por %p49, %p50
      %s53 = sadd.s32 %s52, 1
      %p56 = scmp.eq.s32.totalorder %s18, 1
      %p57 = scmp.ne.s32.totalorder %s52, %s54
      %p58 = scmp.eq.s32.totalorder %s18, 0
      %p59 = por %p57, %p58
      %p60 = scmp.ne.s32.totalorder %s52, %s54
      %p61 = scmp.eq.s32.totalorder %s23, 1
      %p62 = por %p60, %p61
      %p63 = scmp.ne.s32.totalorder %s54, %s55
      %p64 = scmp.eq.s32.totalorder %s23, 0
      %p65 = por %p63, %p64
      %p66 = scmp.ne.s32.totalorder %s54, %s55
      %p67 = scmp.eq.s32.totalorder %s24, 1
      %p68 = por %p66, %p67
      %p70 = scmp.ne.s32.totalorder %s55, %s69
      %p71 = scmp.eq.s32.totalorder %s24, 0
      %p72 = por %p70, %p71
      %s74 = sadd.s32 %s73, 1
      %p77 = scmp.eq.s32.totalorder %s18, 1
      %p78 = scmp.ne.s32.totalorder %s73, %s75
      %p79 = scmp.eq.s32.totalorder %s18, 0
      %p80 = por %p78, %p79
      %p81 = scmp.ne.s32.totalorder %s73, %s75
      %p82 = scmp.eq.s32.totalorder %s23, 1
      %p83 = por %p81, %p82
      %p84 = scmp.ne.s32.totalorder %s75, %s76
      %p85 = scmp.eq.s32.totalorder %s23, 0
      %p86 = por %p84, %p85
      %p87 = scmp.ne.s32.totalorder %s75, %s76
      %p88 = scmp.eq.s32.totalorder %s24, 1
      %p89 = por %p87, %p88
      %p91 = scmp.ne.s32.totalorder %s76, %s90
      %p92 = scmp.eq.s32.totalorder %s24, 0
      %p93 = por %p91, %p92
      %s95 = sadd.s32 %s94, 1
      %p98 = scmp.eq.s32.totalorder %s18, 1
      %p99 = scmp.ne.s32.totalorder %s94, %s96
      %p100 = scmp.eq.s32.totalorder %s18, 0
      %p101 = por %p99, %p100
      %p102 = scmp.ne.s32.totalorder %s94, %s96
      %p103 = scmp.eq.s32.totalorder %s23, 1
      %p104 = por %p102, %p103
      %p105 = scmp.ne.s32.totalorder %s96, %s97
      %p106 = scmp.eq.s32.totalorder %s23, 0
      %p107 = por %p105, %p106
      %p108 = scmp.ne.s32.totalorder %s96, %s97
      %p109 = scmp.eq.s32.totalorder %s24, 1
      %p110 = por %p108, %p109
      %p112 = scmp.ne.s32.totalorder %s97, %s111
      %p113 = scmp.eq.s32.totalorder %s24, 0
      %p114 = por %p112, %p113
      %s116 = sadd.s32 %s115, 1
      %p119 = scmp.eq.s32.totalorder %s18, 1
      %p120 = scmp.ne.s32.totalorder %s115, %s117
      %p121 = scmp.eq.s32.totalorder %s18, 0
      %p122 = por %p120, %p121
      %p123 = scmp.ne.s32.totalorder %s115, %s117
      %p124 = scmp.eq.s32.totalorder %s23, 1
      %p125 = por %p123, %p124
      %p126 = scmp.ne.s32.totalorder %s117, %s118
      %p127 = scmp.eq.s32.totalorder %s23, 0
      %p128 = por %p126, %p127
      %p129 = scmp.ne.s32.totalorder %s117, %s118
      %p130 = scmp.eq.s32.totalorder %s24, 1
      %p131 = por %p129, %p130
      %p133 = scmp.ne.s32.totalorder %s118, %s132
      %p134 = scmp.eq.s32.totalorder %s24, 0
      %p135 = por %p133, %p134
      %s137 = sadd.s32 %s136, 1
      %p140 = scmp.eq.s32.totalorder %s18, 1
      %p141 = scmp.ne.s32.totalorder %s136, %s138
      %p142 = scmp.eq.s32.totalorder %s18, 0
      %p143 = por %p141, %p142
      %p144 = scmp.ne.s32.totalorder %s136, %s138
      %p145 = scmp.eq.s32.totalorder %s23, 1
      %p146 = por %p144, %p145
      %p147 = scmp.ne.s32.totalorder %s138, %s139
      %p148 = scmp.eq.s32.totalorder %s23, 0
      %p149 = por %p147, %p148
      %p150 = scmp.ne.s32.totalorder %s138, %s139
      %p151 = scmp.eq.s32.totalorder %s24, 1
      %p152 = por %p150, %p151
      %p154 = scmp.ne.s32.totalorder %s139, %s153
      %p155 = scmp.eq.s32.totalorder %s24, 0
      %p156 = por %p154, %p155
      %s158 = sadd.s32 %s157, 1
      %p161 = scmp.eq.s32.totalorder %s18, 1
      %p162 = scmp.ne.s32.totalorder %s157, %s159
      %p163 = scmp.eq.s32.totalorder %s18, 0
      %p164 = por %p162, %p163
      %p165 = scmp.ne.s32.totalorder %s157, %s159
      %p166 = scmp.eq.s32.totalorder %s23, 1
      %p167 = por %p165, %p166
      %p168 = scmp.ne.s32.totalorder %s159, %s160
      %p169 = scmp.eq.s32.totalorder %s23, 0
      %p170 = por %p168, %p169
      %p171 = scmp.ne.s32.totalorder %s159, %s160
      %p172 = scmp.eq.s32.totalorder %s24, 1
      %p173 = por %p171, %p172
      %p175 = scmp.ne.s32.totalorder %s160, %s174
      %p176 = scmp.eq.s32.totalorder %s24, 0
      %p177 = por %p175, %p176
      %s178 = ssub.s32 %s18, %s25
      %p179 = scmp.eq.s32.totalorder %s178, 0
      %s181 = sadd.s32 %s180, 1
      %s182 = scalar_select %p179, %s180, %s181
      %p185 = pneg %p179
      %p186 = scmp.eq.s32.totalorder %s18, 1
      %p187 = por %p185, %p186
      %p188 = scmp.ne.s32.totalorder %s180, %s183
      %p189 = scmp.eq.s32.totalorder %s18, 0
      %p190 = por %p188, %p189
      %p191 = scmp.ne.s32.totalorder %s180, %s183
      %p192 = scmp.eq.s32.totalorder %s23, 1
      %p193 = por %p191, %p192
      %p194 = scmp.ne.s32.totalorder %s183, %s184
      %p195 = scmp.eq.s32.totalorder %s23, 0
      %p196 = por %p194, %p195
      %p197 = scmp.ne.s32.totalorder %s183, %s184
      %p198 = scmp.eq.s32.totalorder %s24, 1
      %p199 = por %p197, %p198
      %p201 = scmp.ne.s32.totalorder %s184, %s200
      %p202 = scmp.eq.s32.totalorder %s24, 0
      %p203 = por %p201, %p202
      %p204 = scmp.le.s32.totalorder 1, %s18
      %p205 = scmp.lt.s32.totalorder %s18, 3
      %p206 = pnand %p204, %p205
      %p207 = pneg %p206
      // Predicated region
      $region9: #{tpu_custom_call.1} parent=5 // pred_check
        _
      $region10: #{tpu_custom_call.1} parent=5 // pred_check_branch
        %209 = sbr.rel (%p206) target = $region12
      $region11: #{tpu_custom_call.1} parent=5 // pred_region
        %s210 = ssub.s32 %s18, 1
        // Predicated region
        $region13: #{tpu_custom_call.1} parent=11 // pred_check
          %p211 = pneg %p65
        $region14: #{tpu_custom_call.1} parent=11 // pred_check_branch
          %213 = sbr.rel (%p211) target = $region16
        $region15: #{tpu_custom_call.1} parent=11 // pred_region
          _
        $region16: #{tpu_custom_call.1} parent=11 // pred_fallthru
          _
        // Predicated region
        $region17: #{tpu_custom_call.1} parent=11 // pred_check
          %p214 = pneg %p86
        $region18: #{tpu_custom_call.1} parent=11 // pred_check_branch
          %216 = sbr.rel (%p214) target = $region20
        $region19: #{tpu_custom_call.1} parent=11 // pred_region
          _
        $region20: #{tpu_custom_call.1} parent=11 // pred_fallthru
          _
        // Predicated region
        $region21: #{tpu_custom_call.1} parent=11 // pred_check
          %p217 = pneg %p107
        $region22: #{tpu_custom_call.1} parent=11 // pred_check_branch
          %219 = sbr.rel (%p217) target = $region24
        $region23: #{tpu_custom_call.1} parent=11 // pred_region
          _
        $region24: #{tpu_custom_call.1} parent=11 // pred_fallthru
          _
        // Predicated region
        $region25: #{tpu_custom_call.1} parent=11 // pred_check
          %p220 = pneg %p128
        $region26: #{tpu_custom_call.1} parent=11 // pred_check_branch
          %222 = sbr.rel (%p220) target = $region28
        $region27: #{tpu_custom_call.1} parent=11 // pred_region
          _
        $region28: #{tpu_custom_call.1} parent=11 // pred_fallthru
          _
        // Predicated region
        $region29: #{tpu_custom_call.1} parent=11 // pred_check
          %p223 = pneg %p149
        $region30: #{tpu_custom_call.1} parent=11 // pred_check_branch
          %225 = sbr.rel (%p223) target = $region32
        $region31: #{tpu_custom_call.1} parent=11 // pred_region
          _
        $region32: #{tpu_custom_call.1} parent=11 // pred_fallthru
          _
        // Predicated region
        $region33: #{tpu_custom_call.1} parent=11 // pred_check
          %p226 = pneg %p170
        $region34: #{tpu_custom_call.1} parent=11 // pred_check_branch
          %228 = sbr.rel (%p226) target = $region36
        $region35: #{tpu_custom_call.1} parent=11 // pred_region
          _
        $region36: #{tpu_custom_call.1} parent=11 // pred_fallthru
          _
      $region12: #{tpu_custom_call.1} parent=5 // pred_fallthru
        _
      %p229 = scmp.lt.s32.totalorder %s18, 2
      // Predicated region
      $region37: #{tpu_custom_call.1} parent=5 // pred_check
        %p230 = pneg %p229
      $region38: #{tpu_custom_call.1} parent=5 // pred_check_branch
        %232 = sbr.rel (%p230) target = $region40
      $region39: #{tpu_custom_call.1} parent=5 // pred_region
        // Predicated region
        $region41: #{tpu_custom_call.1} parent=39 // pred_check
          %p233 = pneg %p38
        $region42: #{tpu_custom_call.1} parent=39 // pred_check_branch
          %235 = sbr.rel (%p233) target = $region44
        $region43: #{tpu_custom_call.1} parent=39 // pred_region
          %s236 = smul.u32 4, %s18
          %p237 = scmp.lt.s32.totalorder %s236, 7
          %s238 = scalar_select %p237, %s236, 7
          %s239 = scalar_lea.vmem %s0, %s238
          %s240 = smul.u32 4, %s18
        $region44: #{tpu_custom_call.1} parent=39 // pred_fallthru
          _
      $region40: #{tpu_custom_call.1} parent=5 // pred_fallthru
        _
      %p241 = scmp.le.s32.totalorder 1, %s18
      %p242 = scmp.lt.s32.totalorder %s18, 3
      %p243 = pnand %p241, %p242
      %p244 = pneg %p243
      // Predicated region
      $region45: #{tpu_custom_call.1} parent=5 // pred_check
        _
      $region46: #{tpu_custom_call.1} parent=5 // pred_check_branch
        %246 = sbr.rel (%p243) target = $region48
      $region47: #{tpu_custom_call.1} parent=5 // pred_region
        %s247 = ssub.s32 %s18, 1
        %s248 = smul.u32 4, %s23
        %p249 = scmp.lt.s32.totalorder %s248, 7
        %s250 = scalar_select %p249, %s248, 7
        %s251 = scalar_lea.vmem %s0, %s250
        %p252 = pneg %p44
        %p253 = pneg %p41
        %p254 = pneg %p65
        %p255 = pneg %p62
        %p256 = pneg %p86
        %p257 = pneg %p83
        %p258 = pneg %p107
        %p259 = pneg %p104
        %p260 = pneg %p128
        %p261 = pneg %p125
        %p262 = pneg %p149
        %p263 = pneg %p146
        %p264 = pneg %p170
        %p265 = pneg %p167
        %p266 = pneg %p196
        %p267 = pneg %p193
        %s268 = sand.u32 %s183, 1
        %s269 = scalar_lea.sflag [#allocation4], %s268
        %s270 = sand.u32 %s183, 1
        %s271 = smul.addr %s270, 4
        %s272 = scalar_lea.vmem [#allocation3], %s271
        %s273 = smul.u32 4, %s23
        %p274 = scmp.lt.s32.totalorder %s273, 7
        %s275 = scalar_select %p274, %s273, 7
        %s276 = scalar_lea.vmem %s0, %s275
        %s277 = smul.u32 4, %s23
        %s278 = smul.u32 4, %s23
        %v280 = vld [vmem:[%s276] sm:$0xf]
        %v281 = vld [vmem:[%s1] sm:$0xf]
        %v282 = vld [vmem:[%s1 + $0x4] sm:$0xf]
        %v283 = vld [vmem:[%s1 + $0x8] sm:$0x3]
        %v284 = vld [vmem:[%s2] sm:$0xff]
        %v285 = vld [vmem:[%s2 + $0x8] sm:$0xff]
        %v286 = vld [vmem:[%s2 + $0x10] sm:$0xf]
        %288 = vset.pattern.permute.xlu0 0
        %289 = vperm.xlu0 %288, %v284
        %v290 = vpop.permute.xlu0 %289
        %293 = vset.pattern.permute.xlu0 0
        %294 = vperm.xlu0 %293, %v285
        %v295 = vpop.permute.xlu0 %294
        %298 = vset.pattern.permute.xlu0 0
        %299 = vperm.xlu0 %298, %v286
        %v300 = vpop.permute.xlu0 %299
        %v305 = vunpack.c.l.b16 %v281
        %v306 = vunpack.c.l.b16 %v282
        %v307 = vunpack.c.l.b16 %v283
        %v308 = vpack.c.b16 %v306, %v305
        %v309 = vpack.c.b16 %v307, %v307
        %311 = vst [vmem:[#allocation1] ss:$9 sm:$0xff] %v280
        %v312 = vld [vmem:[#allocation1] sm:$0xff]
        %v313 = vld [vmem:[#allocation1 + $0x9] sm:$0xff]
        %v314 = vld [vmem:[#allocation1 + $0x12] sm:$0xff]
        %v315 = vld [vmem:[#allocation1 + $0x1b] sm:$0xff]
        %vm316 = vcmask 15360
        %v318 = vsel %vm316, %v308, 0
        %v321 = vsel %vm316, %v309, 0
        %vm323 = vcmask 1040384
        %v324 = vsel %vm323, %v312, 0
        %v326 = vsel %vm323, %v313, 0
        %v328 = vsel %vm323, %v314, 0
        %v330 = vsel %vm323, %v315, 0
        %332 = vmatpush.bf16.msra.mxu0 0
        %333 = vmatpush.bf16.msra.mxu0 0
        %334 = vmatpush.bf16.msra.mxu0 0
        %335 = vmatpush.bf16.msra.mxu0 0
        %336 = vmatpush.bf16.msra.mxu0 0
        %337 = vmatpush.bf16.msra.mxu0 0
        %338 = vmatpush.bf16.msra.mxu0 0
        %339 = vmatpush.bf16.msra.mxu0 %v324
        %340 = vmatmul.bf16.gmra.mxu0 %v318
        %v341 = vpop.f32.mrf.mxu0
        %v342 = vadd.f32 %v290, %v341
        %v343 = vpop.f32.mrf.mxu0
        %v344 = vadd.f32 %v295, %v343
        %345 = vmatmul.bf16.gmra.mxu0 %v321
        %v346 = vpop.f32.mrf.mxu0
        %v347 = vadd.f32 %v300, %v346
        %v348 = vpop.f32.mrf.mxu0
        %349 = vdwg.mxu0
        %350 = vmatpush.bf16.msra.mxu0 0
        %351 = vmatpush.bf16.msra.mxu0 0
        %352 = vmatpush.bf16.msra.mxu0 0
        %353 = vmatpush.bf16.msra.mxu0 0
        %354 = vmatpush.bf16.msra.mxu0 0
        %355 = vmatpush.bf16.msra.mxu0 0
        %356 = vmatpush.bf16.msra.mxu0 0
        %357 = vmatpush.bf16.msra.mxu0 %v326
        %358 = vmatmul.bf16.gmra.mxu0 %v318
        %v359 = vpop.f32.mrf.mxu0
        %v360 = vadd.f32 %v290, %v359
        %v361 = vpop.f32.mrf.mxu0
        %v362 = vadd.f32 %v295, %v361
        %363 = vmatmul.bf16.gmra.mxu0 %v321
        %v364 = vpop.f32.mrf.mxu0
        %v365 = vadd.f32 %v300, %v364
        %v366 = vpop.f32.mrf.mxu0
        %367 = vdwg.mxu0
        %368 = vmatpush.bf16.msra.mxu0 0
        %369 = vmatpush.bf16.msra.mxu0 0
        %370 = vmatpush.bf16.msra.mxu0 0
        %371 = vmatpush.bf16.msra.mxu0 0
        %372 = vmatpush.bf16.msra.mxu0 0
        %373 = vmatpush.bf16.msra.mxu0 0
        %374 = vmatpush.bf16.msra.mxu0 0
        %375 = vmatpush.bf16.msra.mxu0 %v328
        %376 = vmatmul.bf16.gmra.mxu0 %v318
        %v377 = vpop.f32.mrf.mxu0
        %v378 = vadd.f32 %v290, %v377
        %v379 = vpop.f32.mrf.mxu0
        %v380 = vadd.f32 %v295, %v379
        %381 = vmatmul.bf16.gmra.mxu0 %v321
        %v382 = vpop.f32.mrf.mxu0
        %v383 = vadd.f32 %v300, %v382
        %v384 = vpop.f32.mrf.mxu0
        %385 = vdwg.mxu0
        %386 = vmatpush.bf16.msra.mxu0 0
        %387 = vmatpush.bf16.msra.mxu0 0
        %388 = vmatpush.bf16.msra.mxu0 0
        %389 = vmatpush.bf16.msra.mxu0 0
        %390 = vmatpush.bf16.msra.mxu0 0
        %391 = vmatpush.bf16.msra.mxu0 0
        %392 = vmatpush.bf16.msra.mxu0 0
        %393 = vmatpush.bf16.msra.mxu0 %v330
        %394 = vmatmul.bf16.gmra.mxu0 %v318
        %v395 = vpop.f32.mrf.mxu0
        %v396 = vadd.f32 %v290, %v395
        %v397 = vpop.f32.mrf.mxu0
        %v398 = vadd.f32 %v295, %v397
        %399 = vmatmul.bf16.gmra.mxu0 %v321
        %v400 = vpop.f32.mrf.mxu0
        %v401 = vadd.f32 %v300, %v400
        %v402 = vpop.f32.mrf.mxu0
        %403 = vdwg.mxu0
        %v404 = vmax.f32 %v342, 0.0
        %v405 = vmax.f32 %v360, 0.0
        %v406 = vmax.f32 %v378, 0.0
        %v407 = vmax.f32 %v396, 0.0
        %v408 = vmax.f32 %v344, 0.0
        %v409 = vmax.f32 %v362, 0.0
        %v410 = vmax.f32 %v380, 0.0
        %v411 = vmax.f32 %v398, 0.0
        %v412 = vmax.f32 %v347, 0.0
        %v413 = vmax.f32 %v365, 0.0
        %v414 = vmax.f32 %v383, 0.0
        %v415 = vmax.f32 %v401, 0.0
        %v416 = vpack.c.bf16 %v408, %v404
        %v417 = vpack.c.bf16 %v409, %v405
        %v418 = vpack.c.bf16 %v410, %v406
        %v419 = vpack.c.bf16 %v411, %v407
        %v420 = vpack.c.bf16 %v412, %v412
        %v421 = vpack.c.bf16 %v413, %v413
        %v422 = vpack.c.bf16 %v414, %v414
        %v423 = vpack.c.bf16 %v415, %v415
        %v424 = vld [vmem:[%s3] sm:$0xf]
        %v425 = vld [vmem:[%s3 + $0x4] sm:$0xf]
        %v426 = vld [vmem:[%s3 + $0x8] sm:$0x3]
        %v427 = vld [vmem:[%s4] sm:$0xff]
        %v428 = vld [vmem:[%s4 + $0x8] sm:$0xff]
        %v429 = vld [vmem:[%s4 + $0x10] sm:$0xf]
        %431 = vset.pattern.permute.xlu0 0
        %432 = vperm.xlu0 %431, %v427
        %v433 = vpop.permute.xlu0 %432
        %436 = vset.pattern.permute.xlu0 0
        %437 = vperm.xlu0 %436, %v428
        %v438 = vpop.permute.xlu0 %437
        %441 = vset.pattern.permute.xlu0 0
        %442 = vperm.xlu0 %441, %v429
        %v443 = vpop.permute.xlu0 %442
        %v448 = vunpack.c.l.b16 %v424
        %v449 = vunpack.c.l.b16 %v425
        %v450 = vunpack.c.l.b16 %v426
        %v451 = vpack.c.b16 %v449, %v448
        %v452 = vpack.c.b16 %v450, %v450
        %vm453 = vcmask 162816
        %v455 = vsel %vm453, %v451, 0
        %v458 = vsel %vm453, %v452, 0
        %vm460 = vcmask 1041408
        %v462 = vsel %vm460, %v420, 0
        %v465 = vsel %vm460, %v421, 0
        %v468 = vsel %vm460, %v422, 0
        %v471 = vsel %vm460, %v423, 0
        %473 = vmatpush.bf16.msra.mxu0 0
        %474 = vmatpush.bf16.msra.mxu0 0
        %475 = vmatpush.bf16.msra.mxu0 0
        %476 = vmatpush.bf16.msra.mxu0 0
        %477 = vmatpush.bf16.msra.mxu0 0
        %478 = vmatpush.bf16.msra.mxu0 0
        %479 = vmatpush.bf16.msra.mxu0 %v462
        %480 = vmatpush.bf16.msra.mxu0 %v416
        %481 = vmatmul.bf16.gmra.mxu0 %v455
        %v482 = vpop.f32.mrf.mxu0
        %v483 = vadd.f32 %v433, %v482
        %v484 = vpop.f32.mrf.mxu0
        %v485 = vadd.f32 %v438, %v484
        %486 = vmatmul.bf16.gmra.mxu0 %v458
        %v487 = vpop.f32.mrf.mxu0
        %v488 = vadd.f32 %v443, %v487
        %v489 = vpop.f32.mrf.mxu0
        %490 = vdwg.mxu0
        %491 = vmatpush.bf16.msra.mxu0 0
        %492 = vmatpush.bf16.msra.mxu0 0
        %493 = vmatpush.bf16.msra.mxu0 0
        %494 = vmatpush.bf16.msra.mxu0 0
        %495 = vmatpush.bf16.msra.mxu0 0
        %496 = vmatpush.bf16.msra.mxu0 0
        %497 = vmatpush.bf16.msra.mxu0 %v465
        %498 = vmatpush.bf16.msra.mxu0 %v417
        %499 = vmatmul.bf16.gmra.mxu0 %v455
        %v500 = vpop.f32.mrf.mxu0
        %v501 = vadd.f32 %v433, %v500
        %v502 = vpop.f32.mrf.mxu0
        %v503 = vadd.f32 %v438, %v502
        %504 = vmatmul.bf16.gmra.mxu0 %v458
        %v505 = vpop.f32.mrf.mxu0
        %v506 = vadd.f32 %v443, %v505
        %v507 = vpop.f32.mrf.mxu0
        %508 = vdwg.mxu0
        %509 = vmatpush.bf16.msra.mxu0 0
        %510 = vmatpush.bf16.msra.mxu0 0
        %511 = vmatpush.bf16.msra.mxu0 0
        %512 = vmatpush.bf16.msra.mxu0 0
        %513 = vmatpush.bf16.msra.mxu0 0
        %514 = vmatpush.bf16.msra.mxu0 0
        %515 = vmatpush.bf16.msra.mxu0 %v468
        %516 = vmatpush.bf16.msra.mxu0 %v418
        %517 = vmatmul.bf16.gmra.mxu0 %v455
        %v518 = vpop.f32.mrf.mxu0
        %v519 = vadd.f32 %v433, %v518
        %v520 = vpop.f32.mrf.mxu0
        %v521 = vadd.f32 %v438, %v520
        %522 = vmatmul.bf16.gmra.mxu0 %v458
        %v523 = vpop.f32.mrf.mxu0
        %v524 = vadd.f32 %v443, %v523
        %v525 = vpop.f32.mrf.mxu0
        %526 = vdwg.mxu0
        %527 = vmatpush.bf16.msra.mxu0 0
        %528 = vmatpush.bf16.msra.mxu0 0
        %529 = vmatpush.bf16.msra.mxu0 0
        %530 = vmatpush.bf16.msra.mxu0 0
        %531 = vmatpush.bf16.msra.mxu0 0
        %532 = vmatpush.bf16.msra.mxu0 0
        %533 = vmatpush.bf16.msra.mxu0 %v471
        %534 = vmatpush.bf16.msra.mxu0 %v419
        %535 = vmatmul.bf16.gmra.mxu0 %v455
        %v536 = vpop.f32.mrf.mxu0
        %v537 = vadd.f32 %v433, %v536
        %v538 = vpop.f32.mrf.mxu0
        %v539 = vadd.f32 %v438, %v538
        %540 = vmatmul.bf16.gmra.mxu0 %v458
        %v541 = vpop.f32.mrf.mxu0
        %v542 = vadd.f32 %v443, %v541
        %v543 = vpop.f32.mrf.mxu0
        %544 = vdwg.mxu0
        %v545 = vmax.f32 %v483, 0.0
        %v546 = vmax.f32 %v501, 0.0
        %v547 = vmax.f32 %v519, 0.0
        %v548 = vmax.f32 %v537, 0.0
        %v549 = vmax.f32 %v485, 0.0
        %v550 = vmax.f32 %v503, 0.0
        %v551 = vmax.f32 %v521, 0.0
        %v552 = vmax.f32 %v539, 0.0
        %v553 = vmax.f32 %v488, 0.0
        %v554 = vmax.f32 %v506, 0.0
        %v555 = vmax.f32 %v524, 0.0
        %v556 = vmax.f32 %v542, 0.0
        %v557 = vpack.c.bf16 %v549, %v545
        %v558 = vpack.c.bf16 %v550, %v546
        %v559 = vpack.c.bf16 %v551, %v547
        %v560 = vpack.c.bf16 %v552, %v548
        %v561 = vpack.c.bf16 %v553, %v553
        %v562 = vpack.c.bf16 %v554, %v554
        %v563 = vpack.c.bf16 %v555, %v555
        %v564 = vpack.c.bf16 %v556, %v556
        %v565 = vld [vmem:[%s5] sm:$0x1]
        %v566 = vld [vmem:[#allocation2] sm:$0x1]
        %568 = vset.pattern.permute.xlu0 0
        %569 = vperm.xlu0 %568, %v566
        %v570 = vpop.permute.xlu0 %569
        %v572 = vperm.slane %v570, 0
        %v574 = vsel %vm453, %v565, 0
        %v577 = vsel %vm460, %v561, 0
        %v580 = vsel %vm460, %v562, 0
        %v583 = vsel %vm460, %v563, 0
        %v586 = vsel %vm460, %v564, 0
        %588 = vmatpush.bf16.msra.mxu0 0
        %589 = vmatpush.bf16.msra.mxu0 0
        %590 = vmatpush.bf16.msra.mxu0 0
        %591 = vmatpush.bf16.msra.mxu0 0
        %592 = vmatpush.bf16.msra.mxu0 0
        %593 = vmatpush.bf16.msra.mxu0 0
        %594 = vmatpush.bf16.msra.mxu0 %v577
        %595 = vmatpush.bf16.msra.mxu0 %v557
        %596 = vmatmul.bf16.gmra.mxu0 %v574
        %v597 = vpop.f32.mrf.mxu0
        %v598 = vadd.f32 %v572, %v597
        %v599 = vpop.f32.mrf.mxu0
        %600 = vdwg.mxu0
        %601 = vmatpush.bf16.msra.mxu0 0
        %602 = vmatpush.bf16.msra.mxu0 0
        %603 = vmatpush.bf16.msra.mxu0 0
        %604 = vmatpush.bf16.msra.mxu0 0
        %605 = vmatpush.bf16.msra.mxu0 0
        %606 = vmatpush.bf16.msra.mxu0 0
        %607 = vmatpush.bf16.msra.mxu0 %v580
        %608 = vmatpush.bf16.msra.mxu0 %v558
        %609 = vmatmul.bf16.gmra.mxu0 %v574
        %v610 = vpop.f32.mrf.mxu0
        %v611 = vadd.f32 %v572, %v610
        %v612 = vpop.f32.mrf.mxu0
        %613 = vdwg.mxu0
        %614 = vmatpush.bf16.msra.mxu0 0
        %615 = vmatpush.bf16.msra.mxu0 0
        %616 = vmatpush.bf16.msra.mxu0 0
        %617 = vmatpush.bf16.msra.mxu0 0
        %618 = vmatpush.bf16.msra.mxu0 0
        %619 = vmatpush.bf16.msra.mxu0 0
        %620 = vmatpush.bf16.msra.mxu0 %v583
        %621 = vmatpush.bf16.msra.mxu0 %v559
        %622 = vmatmul.bf16.gmra.mxu0 %v574
        %v623 = vpop.f32.mrf.mxu0
        %v624 = vadd.f32 %v572, %v623
        %v625 = vpop.f32.mrf.mxu0
        %626 = vdwg.mxu0
        %627 = vmatpush.bf16.msra.mxu0 0
        %628 = vmatpush.bf16.msra.mxu0 0
        %629 = vmatpush.bf16.msra.mxu0 0
        %630 = vmatpush.bf16.msra.mxu0 0
        %631 = vmatpush.bf16.msra.mxu0 0
        %632 = vmatpush.bf16.msra.mxu0 0
        %633 = vmatpush.bf16.msra.mxu0 %v586
        %634 = vmatpush.bf16.msra.mxu0 %v560
        %635 = vmatmul.bf16.gmra.mxu0 %v574
        %v636 = vpop.f32.mrf.mxu0
        %v637 = vadd.f32 %v572, %v636
        %v638 = vpop.f32.mrf.mxu0
        %639 = vdwg.mxu0
        %v644 = vrot.slane %v611, 7
        %v645 = vrot.slane %v624, 6
        %v646 = vrot.slane %v637, 5
        %v647 = vsel %vm323, %v598, %v644
        %vm648 = vcmask 1042434
        %v649 = vsel %vm648, %v645, %v646
        %v650 = vsel %vm460, %v647, %v649
        %v652 = vlaneseq
        %vm653 = vcmp.ge.s32.totalorder %v652, 0
        %vm654 = vcmp.lt.s32.totalorder %v652, 512
        %vm655 = vmand %vm653, %vm654
        %656 = vst.msk [vmem:[%s272] sm:$0xf] %vm655, %v650
        %s657 = sand.u32 %s183, 1
        %s658 = scalar_lea.sflag [#allocation4], %s657
        %s659 = sand.u32 %s183, 1
        %s660 = smul.addr %s659, 4
        %s661 = scalar_lea.vmem [#allocation3], %s660
        // Predicated region
        $region49: #{tpu_custom_call.1} parent=47 // pred_check
          %p662 = pneg %p193
        $region50: #{tpu_custom_call.1} parent=47 // pred_check_branch
          %664 = sbr.rel (%p662) target = $region52
        $region51: #{tpu_custom_call.1} parent=47 // pred_region
          %s665 = smul.u32 4, %s23
          %667 = vsyncadd %s658, 0
          %s668 = scalar_lea.hbm %s7, %s665
          %s670 = sshll.u32 %s661, 4
          %s671 = int_to_ptr.vmem [resolvable:$true] %s670
          %s672 = sshll.u32 %s668, 4
          %s673 = int_to_ptr.hbm [resolvable:$true] %s672
          %675 = dma.vmem_to_hbm [thread:$0]  %s671, 64, %s673, %s658
        $region52: #{tpu_custom_call.1} parent=47 // pred_fallthru
          _
      $region48: #{tpu_custom_call.1} parent=5 // pred_fallthru
        _
      %p676 = scmp.le.s32.totalorder 2, %s18
      // Predicated region
      $region53: #{tpu_custom_call.1} parent=5 // pred_check
        %p677 = pneg %p676
      $region54: #{tpu_custom_call.1} parent=5 // pred_check_branch
        %679 = sbr.rel (%p677) target = $region56
      $region55: #{tpu_custom_call.1} parent=5 // pred_region
        %s680 = ssub.s32 %s18, 2
        // Predicated region
        $region57: #{tpu_custom_call.1} parent=55 // pred_check
          %p681 = pneg %p199
        $region58: #{tpu_custom_call.1} parent=55 // pred_check_branch
          %683 = sbr.rel (%p681) target = $region60
        $region59: #{tpu_custom_call.1} parent=55 // pred_region
          %s684 = sand.u32 %s184, 1
          %s685 = scalar_lea.sflag [#allocation4], %s684
          %s686 = sand.u32 %s184, 1
          %s687 = smul.addr %s686, 4
          %s688 = scalar_lea.vmem [#allocation3], %s687
          %690 = dma.done %s685, 64
        $region60: #{tpu_custom_call.1} parent=55 // pred_fallthru
          _
      $region56: #{tpu_custom_call.1} parent=5 // pred_fallthru
        _
    $region6: #{tpu_custom_call.1} parent=1 // loop_footer
      %s22 = sadd.s32 1, %s18
    $region7: #{tpu_custom_call.1} parent=1 // loop_footer_branch
      %17 = sbr.rel target = $region3
    $region8: #{tpu_custom_call.1} parent=1 // loop_exit
      _
    %691 = vsyncpa [#allocation4], 1
    %s692 = scalar_lea.sflag [#allocation4], 1
    %693 = vsyncpa %s692, 1

</llo_original>
